<compile_context>
chip_gen: v5e
topology: v5e:2x2
jax: 0.10.0
libtpu: 0.0.40
codegen_flags: <defaults>
</compile_context>

<pallas_src>
import jax
import jax.numpy as jnp
from jax import lax
from jax.experimental import pallas as pl
from jax.experimental.pallas import tpu as pltpu

LANE = 128  # TPU vreg lane width


def _classifier_kernel(x_ref, w1_ref, b1_ref, w2_ref, b2_ref, w3_ref, b3_ref,
                       o_ref):
    """Fused 3-layer MLP for one batch tile.

    x_ref : (TB, D_in)
    w*_ref: (D_out_l, D_in_l)   PyTorch nn.Linear layout; contraction on dim 1
    b*_ref: (1, D_out_l)        broadcast over the batch (sublane) axis
    o_ref : (TB, D3_pad)        lane-dense (multiple of 128) padded output
    """
    # Contract x's feature dim (1) with the weight's D_in dim (1):
    #   [TB, D_in] x [D_out, D_in] -> [TB, D_out]   (no wrapper transpose)
    dn = (((1,), (1,)), ((), ()))

    # Layer 1: Linear(39 -> 256) + ReLU
    h = lax.dot_general(x_ref[...], w1_ref[...], dn,
                        preferred_element_type=jnp.float32)
    h = jnp.maximum(h + b1_ref[...], 0.0)

    # Layer 2: Linear(256 -> 256) + ReLU
    h = lax.dot_general(h, w2_ref[...], dn, preferred_element_type=jnp.float32)
    h = jnp.maximum(h + b2_ref[...], 0.0)

    # Layer 3: Linear(256 -> 41) (weight zero-padded to 128 rows), no ReLU.
    o = lax.dot_general(h, w3_ref[...], dn, preferred_element_type=jnp.float32)
    o_ref[...] = (o + b3_ref[...]).astype(o_ref.dtype)


def classifier_forward(x, params, *, batch_tile=256):
    """y = Linear3(ReLU(Linear2(ReLU(Linear1(x))))), matching the PyTorch module.

    x:      [B, D_in]        float32
    params: ((w1, b1), (w2, b2), (w3, b3)) with w: [D_out, D_in], b: [D_out]
    """
    (w1, b1), (w2, b2), (w3, b3) = params
    B, D_in = x.shape
    H1 = w1.shape[0]
    H2 = w2.shape[0]
    D_out = w3.shape[0]

    # --- Lane-dense final layer: pad D_out (41) up to a multiple of 128. ---
    D_out_p = max(LANE, ((D_out + LANE - 1) // LANE) * LANE)
    w3p = jnp.zeros((D_out_p, w3.shape[1]), w3.dtype).at[:D_out].set(w3)
    b3p = jnp.zeros((D_out_p,), b3.dtype).at[:D_out].set(b3)

    b1r = b1.reshape(1, H1)
    b2r = b2.reshape(1, H2)
    b3r = b3p.reshape(1, D_out_p)

    # --- Batch tiling: sublane block dim must be a multiple of 8 or full extent.
    if B <= batch_tile:
        tb, Bp = B, B            # single tile == full extent -> always legal
        xp = x
    else:
        tb = batch_tile          # multiple of 8
        Bp = pl.cdiv(B, tb) * tb
        xp = jnp.pad(x, ((0, Bp - B), (0, 0))) if Bp != B else x

    grid = (Bp // tb,)

    flops = 2 * Bp * (D_in * H1 + H1 * H2 + H2 * D_out_p)
    bytes_accessed = 4 * (Bp * D_in + D_in * H1 + H1 + H1 * H2 + H2
                          + H2 * D_out_p + D_out_p + Bp * D_out_p)

    out = pl.pallas_call(
        _classifier_kernel,
        out_shape=jax.ShapeDtypeStruct((Bp, D_out_p), x.dtype),
        grid_spec=pltpu.PrefetchScalarGridSpec(
            num_scalar_prefetch=0,
            grid=grid,
            in_specs=[
                # Activations: streamed / double-buffered over the batch grid.
                pl.BlockSpec((tb, D_in), lambda i: (i, 0)),
                # Weights & biases: constant block index -> VMEM-resident.
                pl.BlockSpec((H1, D_in), lambda i: (0, 0)),
                pl.BlockSpec((1, H1), lambda i: (0, 0)),
                pl.BlockSpec((H2, H1), lambda i: (0, 0)),
                pl.BlockSpec((1, H2), lambda i: (0, 0)),
                pl.BlockSpec((D_out_p, H2), lambda i: (0, 0)),
                pl.BlockSpec((1, D_out_p), lambda i: (0, 0)),
            ],
            out_specs=pl.BlockSpec((tb, D_out_p), lambda i: (i, 0)),
        ),
        compiler_params=pltpu.CompilerParams(
            # Batch rows are independent -> megacore-shardable on v7x.
            dimension_semantics=("parallel",),
        ),
        cost_estimate=pl.CostEstimate(
            flops=flops, transcendentals=0, bytes_accessed=bytes_accessed),
    )(xp, w1, b1r, w2, b2r, w3p, b3r)

    # Strip batch/output padding (layout plumbing only).
    return out[:B, :D_out]


if __name__ == "__main__":
    # Shapes implied by the module spec.
    concat_nframes = 1
    input_dim = 39 * concat_nframes   # 39
    hidden_dim = 256
    output_dim = 41
    batch = 8

    key = jax.random.PRNGKey(0)
    keys = jax.random.split(key, 7)

    x = jax.random.normal(keys[0], (batch, input_dim), dtype=jnp.float32)

    def linear_params(kw, kb, d_in, d_out):
        w = jax.random.normal(kw, (d_out, d_in), dtype=jnp.float32) / jnp.sqrt(
            jnp.float32(d_in))
        b = jax.random.normal(kb, (d_out,), dtype=jnp.float32) * 0.01
        return w, b

    p1 = linear_params(keys[1], keys[2], input_dim, hidden_dim)   # 39 -> 256
    p2 = linear_params(keys[3], keys[4], hidden_dim, hidden_dim)  # 256 -> 256
    p3 = linear_params(keys[5], keys[6], hidden_dim, output_dim)  # 256 -> 41

    y = classifier_forward(x, (p1, p2, p3))
    jax.block_until_ready(y)

    # Plain-JAX reference of the PyTorch forward.
    h = jnp.maximum(x @ p1[0].T + p1[1], 0.0)
    h = jnp.maximum(h @ p2[0].T + p2[1], 0.0)
    y_ref = h @ p3[0].T + p3[1]

    assert y.shape == (batch, output_dim)
    assert jnp.allclose(y, y_ref, atol=1e-4, rtol=1e-4)

    print("KERNEL_OK")
</pallas_src>

<mosaic_0001>
module attributes {stable_mosaic.version = 11 : i64} {
  func.func @_classifier_kernel(%arg0: i32, %arg1: memref<8x39xf32, #tpu.memory_space<vmem>>, %arg2: memref<256x39xf32, #tpu.memory_space<vmem>>, %arg3: memref<1x256xf32, #tpu.memory_space<vmem>>, %arg4: memref<256x256xf32, #tpu.memory_space<vmem>>, %arg5: memref<1x256xf32, #tpu.memory_space<vmem>>, %arg6: memref<128x256xf32, #tpu.memory_space<vmem>>, %arg7: memref<1x128xf32, #tpu.memory_space<vmem>>, %arg8: memref<8x128xf32, #tpu.memory_space<vmem>>) attributes {dimension_semantics = [#tpu.dimension_semantics<parallel>], iteration_bounds = array<i64: 1>, scalar_prefetch = 0 : i64, scratch_operands = 0 : i64, tpu.core_type = #tpu.core_type<tc>, window_params = [{transform_indices = @transform_0, window_bounds = array<i64: 8, 39>}, {pipeline_mode = #tpu.pipeline_mode<synchronous>, transform_indices = @transform_1, window_bounds = array<i64: 256, 39>}, {pipeline_mode = #tpu.pipeline_mode<synchronous>, transform_indices = @transform_2, window_bounds = array<i64: 1, 256>}, {pipeline_mode = #tpu.pipeline_mode<synchronous>, transform_indices = @transform_3, window_bounds = array<i64: 256, 256>}, {pipeline_mode = #tpu.pipeline_mode<synchronous>, transform_indices = @transform_4, window_bounds = array<i64: 1, 256>}, {pipeline_mode = #tpu.pipeline_mode<synchronous>, transform_indices = @transform_5, window_bounds = array<i64: 128, 256>}, {pipeline_mode = #tpu.pipeline_mode<synchronous>, transform_indices = @transform_6, window_bounds = array<i64: 1, 128>}, {transform_indices = @transform_7, window_bounds = array<i64: 8, 128>}]} {
    %c0 = arith.constant 0 : index
    %c0_0 = arith.constant 0 : index
    %0 = vector.load %arg1[%c0, %c0_0] : memref<8x39xf32, #tpu.memory_space<vmem>>, vector<8x39xf32>
    %c0_1 = arith.constant 0 : index
    %c0_2 = arith.constant 0 : index
    %1 = vector.load %arg2[%c0_1, %c0_2] : memref<256x39xf32, #tpu.memory_space<vmem>>, vector<256x39xf32>
    %cst = arith.constant dense<0.000000e+00> : vector<8x256xf32>
    %2 = tpu.matmul %0, %1, %cst {dimension_numbers = #tpu.dot_dimension_numbers<[1], [1], [0], [0], [0, 0, 1, 0], [], []>} : vector<8x39xf32>, vector<256x39xf32>, vector<8x256xf32> -> vector<8x256xf32>
    %c0_3 = arith.constant 0 : index
    %c0_4 = arith.constant 0 : index
    %3 = vector.load %arg3[%c0_3, %c0_4] : memref<1x256xf32, #tpu.memory_space<vmem>>, vector<1x256xf32>
    %4 = vector.broadcast %3 : vector<1x256xf32> to vector<8x256xf32>
    %5 = arith.addf %2, %4 : vector<8x256xf32>
    %cst_5 = arith.constant 0.000000e+00 : f32
    %6 = vector.broadcast %cst_5 : f32 to vector<8x256xf32>
    %7 = arith.maximumf %5, %6 : vector<8x256xf32>
    %c0_6 = arith.constant 0 : index
    %c0_7 = arith.constant 0 : index
    %8 = vector.load %arg4[%c0_6, %c0_7] : memref<256x256xf32, #tpu.memory_space<vmem>>, vector<256x256xf32>
    %cst_8 = arith.constant dense<0.000000e+00> : vector<8x256xf32>
    %9 = tpu.matmul %7, %8, %cst_8 {dimension_numbers = #tpu.dot_dimension_numbers<[1], [1], [0], [0], [0, 0, 1, 0], [], []>} : vector<8x256xf32>, vector<256x256xf32>, vector<8x256xf32> -> vector<8x256xf32>
    %c0_9 = arith.constant 0 : index
    %c0_10 = arith.constant 0 : index
    %10 = vector.load %arg5[%c0_9, %c0_10] : memref<1x256xf32, #tpu.memory_space<vmem>>, vector<1x256xf32>
    %11 = vector.broadcast %10 : vector<1x256xf32> to vector<8x256xf32>
    %12 = arith.addf %9, %11 : vector<8x256xf32>
    %cst_11 = arith.constant 0.000000e+00 : f32
    %13 = vector.broadcast %cst_11 : f32 to vector<8x256xf32>
    %14 = arith.maximumf %12, %13 : vector<8x256xf32>
    %c0_12 = arith.constant 0 : index
    %c0_13 = arith.constant 0 : index
    %15 = vector.load %arg6[%c0_12, %c0_13] : memref<128x256xf32, #tpu.memory_space<vmem>>, vector<128x256xf32>
    %cst_14 = arith.constant dense<0.000000e+00> : vector<8x128xf32>
    %16 = tpu.matmul %14, %15, %cst_14 {dimension_numbers = #tpu.dot_dimension_numbers<[1], [1], [0], [0], [0, 0, 1, 0], [], []>} : vector<8x256xf32>, vector<128x256xf32>, vector<8x128xf32> -> vector<8x128xf32>
    %c0_15 = arith.constant 0 : index
    %c0_16 = arith.constant 0 : index
    %17 = vector.load %arg7[%c0_15, %c0_16] : memref<1x128xf32, #tpu.memory_space<vmem>>, vector<1x128xf32>
    %18 = vector.broadcast %17 : vector<1x128xf32> to vector<8x128xf32>
    %19 = arith.addf %16, %18 : vector<8x128xf32>
    %c0_17 = arith.constant 0 : index
    %c0_18 = arith.constant 0 : index
    %20 = vector.load %arg8[%c0_17, %c0_18] : memref<8x128xf32, #tpu.memory_space<vmem>>, vector<8x128xf32>
    tpu.vector_store %arg8[%c0_17, %c0_18], %19 {strides = array<i32>} : memref<8x128xf32, #tpu.memory_space<vmem>>, vector<8x128xf32>,
    return
  }
  func.func @transform_0(%arg0: i32) -> (i32, i32) {
    %c0_i32 = arith.constant 0 : i32
    %c0_i32_0 = arith.constant 0 : i32
    return %arg0, %c0_i32 : i32, i32
  }
  func.func @transform_1(%arg0: i32) -> (i32, i32) {
    %c0_i32 = arith.constant 0 : i32
    %c0_i32_0 = arith.constant 0 : i32
    %c0_i32_1 = arith.constant 0 : i32
    return %c0_i32, %c0_i32_0 : i32, i32
  }
  func.func @transform_2(%arg0: i32) -> (i32, i32) {
    %c0_i32 = arith.constant 0 : i32
    %c0_i32_0 = arith.constant 0 : i32
    %c0_i32_1 = arith.constant 0 : i32
    return %c0_i32, %c0_i32_0 : i32, i32
  }
  func.func @transform_3(%arg0: i32) -> (i32, i32) {
    %c0_i32 = arith.constant 0 : i32
    %c0_i32_0 = arith.constant 0 : i32
    %c0_i32_1 = arith.constant 0 : i32
    return %c0_i32, %c0_i32_0 : i32, i32
  }
  func.func @transform_4(%arg0: i32) -> (i32, i32) {
    %c0_i32 = arith.constant 0 : i32
    %c0_i32_0 = arith.constant 0 : i32
    %c0_i32_1 = arith.constant 0 : i32
    return %c0_i32, %c0_i32_0 : i32, i32
  }
  func.func @transform_5(%arg0: i32) -> (i32, i32) {
    %c0_i32 = arith.constant 0 : i32
    %c0_i32_0 = arith.constant 0 : i32
    %c0_i32_1 = arith.constant 0 : i32
    return %c0_i32, %c0_i32_0 : i32, i32
  }
  func.func @transform_6(%arg0: i32) -> (i32, i32) {
    %c0_i32 = arith.constant 0 : i32
    %c0_i32_0 = arith.constant 0 : i32
    %c0_i32_1 = arith.constant 0 : i32
    return %c0_i32, %c0_i32_0 : i32, i32
  }
  func.func @transform_7(%arg0: i32) -> (i32, i32) {
    %c0_i32 = arith.constant 0 : i32
    %c0_i32_0 = arith.constant 0 : i32
    return %arg0, %c0_i32 : i32, i32
  }
}

</mosaic_0001>

<llo_original>
// kernel: tpu_custom_call.1
$region0: #{tpu_custom_call.1}
  #allocation0 [shape = 'u32[]', space=smem, size = 0x4, offset = 0x4, fixed_abs, tag = 'smem constant byte address 0x4 - core index']
  #allocation1 [shape = 'u32[72,128]{1,0:T(1,128)}', space=vmem, size = 0x9000, scoped, tag = 'internal scratch']
  %s0 = inlined_call_operand.vmem [shape: f32[8,39], index: 0, kind: input, shape index: {}]
  %s1 = inlined_call_operand.vmem [shape: f32[256,39], index: 1, kind: input, shape index: {}]
  %s2 = inlined_call_operand.vmem [shape: f32[1,256], index: 2, kind: input, shape index: {}]
  %s3 = inlined_call_operand.hbm [shape: f32[256,256], index: 3, kind: input, shape index: {}]
  %s4 = inlined_call_operand.vmem [shape: f32[1,256], index: 4, kind: input, shape index: {}]
  %s5 = inlined_call_operand.vmem [shape: f32[128,256], index: 5, kind: input, shape index: {}]
  %s6 = inlined_call_operand.vmem [shape: f32[1,128], index: 6, kind: input, shape index: {}]
  %s7 = inlined_call_operand.hbm [shape: f32[8,128], index: 7, kind: output, shape index: {}]
  %s8 = sld [smem:[#allocation0]]
  $region42: #{tpu_custom_call.1} parent=0
    _
  %s10 = ssub.s32 1, %s8
  %s11 = scalar_select 0, %s10, %s8
  $region1: #{tpu_custom_call.1} parent=0
    #allocation2 [shape = 'u8[262144]{0}', space=vmem, size = 0x40000, scoped, tag = 'input window, operand 3, single buffered']
    #allocation3 [shape = 's32[1]{0}', space=sflag, size = 0x4, scoped, tag = 'scoped memory for tpu_custom_call.1']
    #allocation4 [shape = 's32[1]{0}', space=sflag, size = 0x4, scoped, tag = 'scoped memory for tpu_custom_call.1']
    #allocation5 [shape = 'u8[4096]{0}', space=vmem, size = 0x1000, scoped, tag = 'output window, operand 0, single buffered']
    %12 = vsyncpa [#allocation3], 0
    %13 = vsyncpa [#allocation4], 0
    // Predicated region
    $region2: #{tpu_custom_call.1} parent=1 // pred_check
      _
    $region3: #{tpu_custom_call.1} parent=1 // pred_check_branch
      %15 = sbr.rel (0) target = $region5
    $region4: #{tpu_custom_call.1} parent=1 // pred_region
      _
    $region5: #{tpu_custom_call.1} parent=1 // pred_fallthru
      _
    // Predicated region
    $region6: #{tpu_custom_call.1} parent=1 // pred_check
      _
    $region7: #{tpu_custom_call.1} parent=1 // pred_check_branch
      %17 = sbr.rel (0) target = $region9
    $region8: #{tpu_custom_call.1} parent=1 // pred_region
      _
    $region9: #{tpu_custom_call.1} parent=1 // pred_fallthru
      _
    // Predicated region
    $region10: #{tpu_custom_call.1} parent=1 // pred_check
      _
    $region11: #{tpu_custom_call.1} parent=1 // pred_check_branch
      %19 = sbr.rel (0) target = $region13
    $region12: #{tpu_custom_call.1} parent=1 // pred_region
      _
    $region13: #{tpu_custom_call.1} parent=1 // pred_fallthru
      _
    // Predicated region
    $region14: #{tpu_custom_call.1} parent=1 // pred_check
      _
    $region15: #{tpu_custom_call.1} parent=1 // pred_check_branch
      %21 = sbr.rel (0) target = $region17
    $region16: #{tpu_custom_call.1} parent=1 // pred_region
      %23 = vsyncadd [#allocation3], 0
      %s24 = sshll.u32 %s3, 4
      %s25 = int_to_ptr.hbm [resolvable:$true] %s24
      %s26 = sshll.u32 [#allocation2], 4
      %s27 = int_to_ptr.vmem [resolvable:$true] %s26
      %32 = dma.hbm_to_vmem [thread:$0]  %s25, 8192, %s27, [#allocation3], 256, 256, 16
    $region17: #{tpu_custom_call.1} parent=1 // pred_fallthru
      _
    // Predicated region
    $region18: #{tpu_custom_call.1} parent=1 // pred_check
      _
    $region19: #{tpu_custom_call.1} parent=1 // pred_check_branch
      %34 = sbr.rel (0) target = $region21
    $region20: #{tpu_custom_call.1} parent=1 // pred_region
      _
    $region21: #{tpu_custom_call.1} parent=1 // pred_fallthru
      _
    // Predicated region
    $region22: #{tpu_custom_call.1} parent=1 // pred_check
      _
    $region23: #{tpu_custom_call.1} parent=1 // pred_check_branch
      %36 = sbr.rel (0) target = $region25
    $region24: #{tpu_custom_call.1} parent=1 // pred_region
      _
    $region25: #{tpu_custom_call.1} parent=1 // pred_fallthru
      _
    // Predicated region
    $region26: #{tpu_custom_call.1} parent=1 // pred_check
      _
    $region27: #{tpu_custom_call.1} parent=1 // pred_check_branch
      %38 = sbr.rel (0) target = $region29
    $region28: #{tpu_custom_call.1} parent=1 // pred_region
      _
    $region29: #{tpu_custom_call.1} parent=1 // pred_fallthru
      _
    // Predicated region
    $region30: #{tpu_custom_call.1} parent=1 // pred_check
      _
    $region31: #{tpu_custom_call.1} parent=1 // pred_check_branch
      %40 = sbr.rel (0) target = $region33
    $region32: #{tpu_custom_call.1} parent=1 // pred_region
      %42 = dma.done [#allocation3], 8192
    $region33: #{tpu_custom_call.1} parent=1 // pred_fallthru
      _
    %v43 = vld [vmem:[%s0] sm:$0xff]
    %v44 = vld [vmem:[%s1] sm:$0xff]
    %v45 = vld [vmem:[%s1 + $0x8] sm:$0xff]
    %v46 = vld [vmem:[%s1 + $0x10] sm:$0xff]
    %v47 = vld [vmem:[%s1 + $0x18] sm:$0xff]
    %v48 = vld [vmem:[%s1 + $0x20] sm:$0xff]
    %v49 = vld [vmem:[%s1 + $0x28] sm:$0xff]
    %v50 = vld [vmem:[%s1 + $0x30] sm:$0xff]
    %v51 = vld [vmem:[%s1 + $0x38] sm:$0xff]
    %v52 = vld [vmem:[%s1 + $0x40] sm:$0xff]
    %v53 = vld [vmem:[%s1 + $0x48] sm:$0xff]
    %v54 = vld [vmem:[%s1 + $0x50] sm:$0xff]
    %v55 = vld [vmem:[%s1 + $0x58] sm:$0xff]
    %v56 = vld [vmem:[%s1 + $0x60] sm:$0xff]
    %v57 = vld [vmem:[%s1 + $0x68] sm:$0xff]
    %v58 = vld [vmem:[%s1 + $0x70] sm:$0xff]
    %v59 = vld [vmem:[%s1 + $0x78] sm:$0xff]
    %v60 = vld [vmem:[%s1 + $0x80] sm:$0xff]
    %v61 = vld [vmem:[%s1 + $0x88] sm:$0xff]
    %v62 = vld [vmem:[%s1 + $0x90] sm:$0xff]
    %v63 = vld [vmem:[%s1 + $0x98] sm:$0xff]
    %v64 = vld [vmem:[%s1 + $0xa0] sm:$0xff]
    %v65 = vld [vmem:[%s1 + $0xa8] sm:$0xff]
    %v66 = vld [vmem:[%s1 + $0xb0] sm:$0xff]
    %v67 = vld [vmem:[%s1 + $0xb8] sm:$0xff]
    %v68 = vld [vmem:[%s1 + $0xc0] sm:$0xff]
    %v69 = vld [vmem:[%s1 + $0xc8] sm:$0xff]
    %v70 = vld [vmem:[%s1 + $0xd0] sm:$0xff]
    %v71 = vld [vmem:[%s1 + $0xd8] sm:$0xff]
    %v72 = vld [vmem:[%s1 + $0xe0] sm:$0xff]
    %v73 = vld [vmem:[%s1 + $0xe8] sm:$0xff]
    %v74 = vld [vmem:[%s1 + $0xf0] sm:$0xff]
    %v75 = vld [vmem:[%s1 + $0xf8] sm:$0xff]
    %v76 = vld [vmem:[%s2] sm:$0x3]
    %v78 = vperm.slane %v76, 0
    %v79 = vperm.slane %v76, 1
    %vm82 = vcmask 318464
    %v84 = vsel %vm82, %v43, 0
    %v87 = vsel %vm82, %v44, 0
    %v90 = vsel %vm82, %v45, 0
    %v93 = vsel %vm82, %v46, 0
    %v96 = vsel %vm82, %v47, 0
    %v99 = vsel %vm82, %v48, 0
    %v102 = vsel %vm82, %v49, 0
    %v105 = vsel %vm82, %v50, 0
    %v108 = vsel %vm82, %v51, 0
    %v111 = vsel %vm82, %v52, 0
    %v114 = vsel %vm82, %v53, 0
    %v117 = vsel %vm82, %v54, 0
    %v120 = vsel %vm82, %v55, 0
    %v123 = vsel %vm82, %v56, 0
    %v126 = vsel %vm82, %v57, 0
    %v129 = vsel %vm82, %v58, 0
    %v132 = vsel %vm82, %v59, 0
    %v135 = vsel %vm82, %v60, 0
    %v138 = vsel %vm82, %v61, 0
    %v141 = vsel %vm82, %v62, 0
    %v144 = vsel %vm82, %v63, 0
    %v147 = vsel %vm82, %v64, 0
    %v150 = vsel %vm82, %v65, 0
    %v153 = vsel %vm82, %v66, 0
    %v156 = vsel %vm82, %v67, 0
    %v159 = vsel %vm82, %v68, 0
    %v162 = vsel %vm82, %v69, 0
    %v165 = vsel %vm82, %v70, 0
    %v168 = vsel %vm82, %v71, 0
    %v171 = vsel %vm82, %v72, 0
    %v174 = vsel %vm82, %v73, 0
    %v177 = vsel %vm82, %v74, 0
    %v180 = vsel %vm82, %v75, 0
    %182 = vmatpush.xpose.msra.mxu0 %v132
    %183 = vmatpush.xpose.msra.mxu0 %v129
    %184 = vmatpush.xpose.msra.mxu0 %v126
    %185 = vmatpush.xpose.msra.mxu0 %v123
    %186 = vmatpush.xpose.msra.mxu0 %v120
    %187 = vmatpush.xpose.msra.mxu0 %v117
    %188 = vmatpush.xpose.msra.mxu0 %v114
    %189 = vmatpush.xpose.msra.mxu0 %v111
    %190 = vmatpush.xpose.msra.mxu0 %v108
    %191 = vmatpush.xpose.msra.mxu0 %v105
    %192 = vmatpush.xpose.msra.mxu0 %v102
    %193 = vmatpush.xpose.msra.mxu0 %v99
    %194 = vmatpush.xpose.msra.mxu0 %v96
    %195 = vmatpush.xpose.msra.mxu0 %v93
    %196 = vmatpush.xpose.msra.mxu0 %v90
    %197 = vmatpush.xpose.msra.mxu0 %v87
    %198 = vmatmul.f32.gmra.mxu0 %v84
    %v199 = vpop.f32.mrf.mxu0
    %v200 = vadd.f32 %v78, %v199
    %201 = vdwg.mxu0
    %202 = vmatpush.xpose.msra.mxu0 %v180
    %203 = vmatpush.xpose.msra.mxu0 %v177
    %204 = vmatpush.xpose.msra.mxu0 %v174
    %205 = vmatpush.xpose.msra.mxu0 %v171
    %206 = vmatpush.xpose.msra.mxu0 %v168
    %207 = vmatpush.xpose.msra.mxu0 %v165
    %208 = vmatpush.xpose.msra.mxu0 %v162
    %209 = vmatpush.xpose.msra.mxu0 %v159
    %210 = vmatpush.xpose.msra.mxu0 %v156
    %211 = vmatpush.xpose.msra.mxu0 %v153
    %212 = vmatpush.xpose.msra.mxu0 %v150
    %213 = vmatpush.xpose.msra.mxu0 %v147
    %214 = vmatpush.xpose.msra.mxu0 %v144
    %215 = vmatpush.xpose.msra.mxu0 %v141
    %216 = vmatpush.xpose.msra.mxu0 %v138
    %217 = vmatpush.xpose.msra.mxu0 %v135
    %218 = vmatmul.f32.gmra.mxu0 %v84
    %v219 = vpop.f32.mrf.mxu0
    %v220 = vadd.f32 %v79, %v219
    %221 = vdwg.mxu0
    %v222 = vmax.f32 %v200, 0.0
    %v223 = vmax.f32 %v220, 0.0
    %v224 = vld [vmem:[#allocation2] sm:$0xff]
    %v225 = vld [vmem:[#allocation2 + $0x8] sm:$0xff]
    %v226 = vld [vmem:[#allocation2 + $0x10] sm:$0xff]
    %v227 = vld [vmem:[#allocation2 + $0x18] sm:$0xff]
    %v228 = vld [vmem:[#allocation2 + $0x20] sm:$0xff]
    %v229 = vld [vmem:[#allocation2 + $0x28] sm:$0xff]
    %v230 = vld [vmem:[#allocation2 + $0x30] sm:$0xff]
    %v231 = vld [vmem:[#allocation2 + $0x38] sm:$0xff]
    %v232 = vld [vmem:[#allocation2 + $0x40] sm:$0xff]
    %v233 = vld [vmem:[#allocation2 + $0x48] sm:$0xff]
    %v234 = vld [vmem:[#allocation2 + $0x50] sm:$0xff]
    %v235 = vld [vmem:[#allocation2 + $0x58] sm:$0xff]
    %v236 = vld [vmem:[#allocation2 + $0x60] sm:$0xff]
    %v237 = vld [vmem:[#allocation2 + $0x68] sm:$0xff]
    %v238 = vld [vmem:[#allocation2 + $0x70] sm:$0xff]
    %v239 = vld [vmem:[#allocation2 + $0x78] sm:$0xff]
    %v240 = vld [vmem:[#allocation2 + $0x80] sm:$0xff]
    %v241 = vld [vmem:[#allocation2 + $0x88] sm:$0xff]
    %v242 = vld [vmem:[#allocation2 + $0x90] sm:$0xff]
    %v243 = vld [vmem:[#allocation2 + $0x98] sm:$0xff]
    %v244 = vld [vmem:[#allocation2 + $0xa0] sm:$0xff]
    %v245 = vld [vmem:[#allocation2 + $0xa8] sm:$0xff]
    %v246 = vld [vmem:[#allocation2 + $0xb0] sm:$0xff]
    %v247 = vld [vmem:[#allocation2 + $0xb8] sm:$0xff]
    %v248 = vld [vmem:[#allocation2 + $0xc0] sm:$0xff]
    %v249 = vld [vmem:[#allocation2 + $0xc8] sm:$0xff]
    %v250 = vld [vmem:[#allocation2 + $0xd0] sm:$0xff]
    %v251 = vld [vmem:[#allocation2 + $0xd8] sm:$0xff]
    %v252 = vld [vmem:[#allocation2 + $0xe0] sm:$0xff]
    %v253 = vld [vmem:[#allocation2 + $0xe8] sm:$0xff]
    %v254 = vld [vmem:[#allocation2 + $0xf0] sm:$0xff]
    %v255 = vld [vmem:[#allocation2 + $0xf8] sm:$0xff]
    %v256 = vld [vmem:[#allocation2 + $0x100] sm:$0xff]
    %v257 = vld [vmem:[#allocation2 + $0x108] sm:$0xff]
    %v258 = vld [vmem:[#allocation2 + $0x110] sm:$0xff]
    %v259 = vld [vmem:[#allocation2 + $0x118] sm:$0xff]
    %v260 = vld [vmem:[#allocation2 + $0x120] sm:$0xff]
    %v261 = vld [vmem:[#allocation2 + $0x128] sm:$0xff]
    %v262 = vld [vmem:[#allocation2 + $0x130] sm:$0xff]
    %v263 = vld [vmem:[#allocation2 + $0x138] sm:$0xff]
    %v264 = vld [vmem:[#allocation2 + $0x140] sm:$0xff]
    %v265 = vld [vmem:[#allocation2 + $0x148] sm:$0xff]
    %v266 = vld [vmem:[#allocation2 + $0x150] sm:$0xff]
    %v267 = vld [vmem:[#allocation2 + $0x158] sm:$0xff]
    %v268 = vld [vmem:[#allocation2 + $0x160] sm:$0xff]
    %v269 = vld [vmem:[#allocation2 + $0x168] sm:$0xff]
    %v270 = vld [vmem:[#allocation2 + $0x170] sm:$0xff]
    %v271 = vld [vmem:[#allocation2 + $0x178] sm:$0xff]
    %v272 = vld [vmem:[#allocation2 + $0x180] sm:$0xff]
    %v273 = vld [vmem:[#allocation2 + $0x188] sm:$0xff]
    %v274 = vld [vmem:[#allocation2 + $0x190] sm:$0xff]
    %v275 = vld [vmem:[#allocation2 + $0x198] sm:$0xff]
    %v276 = vld [vmem:[#allocation2 + $0x1a0] sm:$0xff]
    %v277 = vld [vmem:[#allocation2 + $0x1a8] sm:$0xff]
    %v278 = vld [vmem:[#allocation2 + $0x1b0] sm:$0xff]
    %v279 = vld [vmem:[#allocation2 + $0x1b8] sm:$0xff]
    %v280 = vld [vmem:[#allocation2 + $0x1c0] sm:$0xff]
    %v281 = vld [vmem:[#allocation2 + $0x1c8] sm:$0xff]
    %v282 = vld [vmem:[#allocation2 + $0x1d0] sm:$0xff]
    %v283 = vld [vmem:[#allocation2 + $0x1d8] sm:$0xff]
    %v284 = vld [vmem:[#allocation2 + $0x1e0] sm:$0xff]
    %v285 = vld [vmem:[#allocation2 + $0x1e8] sm:$0xff]
    %v286 = vld [vmem:[#allocation2 + $0x1f0] sm:$0xff]
    %v287 = vld [vmem:[#allocation2 + $0x1f8] sm:$0xff]
    %v288 = vld [vmem:[%s4] sm:$0x3]
    %v290 = vperm.slane %v288, 0
    %v291 = vperm.slane %v288, 1
    %294 = vmatpush.xpose.msra.mxu0 %v254
    %295 = vmatpush.xpose.msra.mxu0 %v252
    %296 = vmatpush.xpose.msra.mxu0 %v250
    %297 = vmatpush.xpose.msra.mxu0 %v248
    %298 = vmatpush.xpose.msra.mxu0 %v246
    %299 = vmatpush.xpose.msra.mxu0 %v244
    %300 = vmatpush.xpose.msra.mxu0 %v242
    %301 = vmatpush.xpose.msra.mxu0 %v240
    %302 = vmatpush.xpose.msra.mxu0 %v238
    %303 = vmatpush.xpose.msra.mxu0 %v236
    %304 = vmatpush.xpose.msra.mxu0 %v234
    %305 = vmatpush.xpose.msra.mxu0 %v232
    %306 = vmatpush.xpose.msra.mxu0 %v230
    %307 = vmatpush.xpose.msra.mxu0 %v228
    %308 = vmatpush.xpose.msra.mxu0 %v226
    %309 = vmatpush.xpose.msra.mxu0 %v224
    %310 = vmatmul.f32.gmra.mxu0 %v222
    %v311 = vpop.f32.mrf.mxu0
    %v312 = vadd.f32 %v290, %v311
    %313 = vdwg.mxu0
    %314 = vmatpush.xpose.msra.mxu0 %v255
    %315 = vmatpush.xpose.msra.mxu0 %v253
    %316 = vmatpush.xpose.msra.mxu0 %v251
    %317 = vmatpush.xpose.msra.mxu0 %v249
    %318 = vmatpush.xpose.msra.mxu0 %v247
    %319 = vmatpush.xpose.msra.mxu0 %v245
    %320 = vmatpush.xpose.msra.mxu0 %v243
    %321 = vmatpush.xpose.msra.mxu0 %v241
    %322 = vmatpush.xpose.msra.mxu0 %v239
    %323 = vmatpush.xpose.msra.mxu0 %v237
    %324 = vmatpush.xpose.msra.mxu0 %v235
    %325 = vmatpush.xpose.msra.mxu0 %v233
    %326 = vmatpush.xpose.msra.mxu0 %v231
    %327 = vmatpush.xpose.msra.mxu0 %v229
    %328 = vmatpush.xpose.msra.mxu0 %v227
    %329 = vmatpush.xpose.msra.mxu0 %v225
    %330 = vmatmul.f32.gmra.mxu0 %v223
    %v331 = vpop.f32.mrf.mxu0
    %v332 = vadd.f32 %v312, %v331
    %333 = vdwg.mxu0
    %334 = vmatpush.xpose.msra.mxu0 %v286
    %335 = vmatpush.xpose.msra.mxu0 %v284
    %336 = vmatpush.xpose.msra.mxu0 %v282
    %337 = vmatpush.xpose.msra.mxu0 %v280
    %338 = vmatpush.xpose.msra.mxu0 %v278
    %339 = vmatpush.xpose.msra.mxu0 %v276
    %340 = vmatpush.xpose.msra.mxu0 %v274
    %341 = vmatpush.xpose.msra.mxu0 %v272
    %342 = vmatpush.xpose.msra.mxu0 %v270
    %343 = vmatpush.xpose.msra.mxu0 %v268
    %344 = vmatpush.xpose.msra.mxu0 %v266
    %345 = vmatpush.xpose.msra.mxu0 %v264
    %346 = vmatpush.xpose.msra.mxu0 %v262
    %347 = vmatpush.xpose.msra.mxu0 %v260
    %348 = vmatpush.xpose.msra.mxu0 %v258
    %349 = vmatpush.xpose.msra.mxu0 %v256
    %350 = vmatmul.f32.gmra.mxu0 %v222
    %v351 = vpop.f32.mrf.mxu0
    %v352 = vadd.f32 %v291, %v351
    %353 = vdwg.mxu0
    %354 = vmatpush.xpose.msra.mxu0 %v287
    %355 = vmatpush.xpose.msra.mxu0 %v285
    %356 = vmatpush.xpose.msra.mxu0 %v283
    %357 = vmatpush.xpose.msra.mxu0 %v281
    %358 = vmatpush.xpose.msra.mxu0 %v279
    %359 = vmatpush.xpose.msra.mxu0 %v277
    %360 = vmatpush.xpose.msra.mxu0 %v275
    %361 = vmatpush.xpose.msra.mxu0 %v273
    %362 = vmatpush.xpose.msra.mxu0 %v271
    %363 = vmatpush.xpose.msra.mxu0 %v269
    %364 = vmatpush.xpose.msra.mxu0 %v267
    %365 = vmatpush.xpose.msra.mxu0 %v265
    %366 = vmatpush.xpose.msra.mxu0 %v263
    %367 = vmatpush.xpose.msra.mxu0 %v261
    %368 = vmatpush.xpose.msra.mxu0 %v259
    %369 = vmatpush.xpose.msra.mxu0 %v257
    %370 = vmatmul.f32.gmra.mxu0 %v223
    %v371 = vpop.f32.mrf.mxu0
    %v372 = vadd.f32 %v352, %v371
    %373 = vdwg.mxu0
    %v374 = vmax.f32 %v332, 0.0
    %v375 = vmax.f32 %v372, 0.0
    %v376 = vld [vmem:[%s5] sm:$0xff]
    %v377 = vld [vmem:[%s5 + $0x8] sm:$0xff]
    %v378 = vld [vmem:[%s5 + $0x10] sm:$0xff]
    %v379 = vld [vmem:[%s5 + $0x18] sm:$0xff]
    %v380 = vld [vmem:[%s5 + $0x20] sm:$0xff]
    %v381 = vld [vmem:[%s5 + $0x28] sm:$0xff]
    %v382 = vld [vmem:[%s5 + $0x30] sm:$0xff]
    %v383 = vld [vmem:[%s5 + $0x38] sm:$0xff]
    %v384 = vld [vmem:[%s5 + $0x40] sm:$0xff]
    %v385 = vld [vmem:[%s5 + $0x48] sm:$0xff]
    %v386 = vld [vmem:[%s5 + $0x50] sm:$0xff]
    %v387 = vld [vmem:[%s5 + $0x58] sm:$0xff]
    %v388 = vld [vmem:[%s5 + $0x60] sm:$0xff]
    %v389 = vld [vmem:[%s5 + $0x68] sm:$0xff]
    %v390 = vld [vmem:[%s5 + $0x70] sm:$0xff]
    %v391 = vld [vmem:[%s5 + $0x78] sm:$0xff]
    %v392 = vld [vmem:[%s5 + $0x80] sm:$0xff]
    %v393 = vld [vmem:[%s5 + $0x88] sm:$0xff]
    %v394 = vld [vmem:[%s5 + $0x90] sm:$0xff]
    %v395 = vld [vmem:[%s5 + $0x98] sm:$0xff]
    %v396 = vld [vmem:[%s5 + $0xa0] sm:$0xff]
    %v397 = vld [vmem:[%s5 + $0xa8] sm:$0xff]
    %v398 = vld [vmem:[%s5 + $0xb0] sm:$0xff]
    %v399 = vld [vmem:[%s5 + $0xb8] sm:$0xff]
    %v400 = vld [vmem:[%s5 + $0xc0] sm:$0xff]
    %v401 = vld [vmem:[%s5 + $0xc8] sm:$0xff]
    %v402 = vld [vmem:[%s5 + $0xd0] sm:$0xff]
    %v403 = vld [vmem:[%s5 + $0xd8] sm:$0xff]
    %v404 = vld [vmem:[%s5 + $0xe0] sm:$0xff]
    %v405 = vld [vmem:[%s5 + $0xe8] sm:$0xff]
    %v406 = vld [vmem:[%s5 + $0xf0] sm:$0xff]
    %v407 = vld [vmem:[%s5 + $0xf8] sm:$0xff]
    %v408 = vld [vmem:[%s6] sm:$0x1]
    %v410 = vperm.slane %v408, 0
    %412 = vmatpush.xpose.msra.mxu0 %v406
    %413 = vmatpush.xpose.msra.mxu0 %v404
    %414 = vmatpush.xpose.msra.mxu0 %v402
    %415 = vmatpush.xpose.msra.mxu0 %v400
    %416 = vmatpush.xpose.msra.mxu0 %v398
    %417 = vmatpush.xpose.msra.mxu0 %v396
    %418 = vmatpush.xpose.msra.mxu0 %v394
    %419 = vmatpush.xpose.msra.mxu0 %v392
    %420 = vmatpush.xpose.msra.mxu0 %v390
    %421 = vmatpush.xpose.msra.mxu0 %v388
    %422 = vmatpush.xpose.msra.mxu0 %v386
    %423 = vmatpush.xpose.msra.mxu0 %v384
    %424 = vmatpush.xpose.msra.mxu0 %v382
    %425 = vmatpush.xpose.msra.mxu0 %v380
    %426 = vmatpush.xpose.msra.mxu0 %v378
    %427 = vmatpush.xpose.msra.mxu0 %v376
    %428 = vmatmul.f32.gmra.mxu0 %v374
    %v429 = vpop.f32.mrf.mxu0
    %v430 = vadd.f32 %v410, %v429
    %431 = vdwg.mxu0
    %432 = vmatpush.xpose.msra.mxu0 %v407
    %433 = vmatpush.xpose.msra.mxu0 %v405
    %434 = vmatpush.xpose.msra.mxu0 %v403
    %435 = vmatpush.xpose.msra.mxu0 %v401
    %436 = vmatpush.xpose.msra.mxu0 %v399
    %437 = vmatpush.xpose.msra.mxu0 %v397
    %438 = vmatpush.xpose.msra.mxu0 %v395
    %439 = vmatpush.xpose.msra.mxu0 %v393
    %440 = vmatpush.xpose.msra.mxu0 %v391
    %441 = vmatpush.xpose.msra.mxu0 %v389
    %442 = vmatpush.xpose.msra.mxu0 %v387
    %443 = vmatpush.xpose.msra.mxu0 %v385
    %444 = vmatpush.xpose.msra.mxu0 %v383
    %445 = vmatpush.xpose.msra.mxu0 %v381
    %446 = vmatpush.xpose.msra.mxu0 %v379
    %447 = vmatpush.xpose.msra.mxu0 %v377
    %448 = vmatmul.f32.gmra.mxu0 %v375
    %v449 = vpop.f32.mrf.mxu0
    %v450 = vadd.f32 %v430, %v449
    %451 = vdwg.mxu0
    %452 = vst [vmem:[#allocation5] sm:$0xff] %v450
    // Predicated region
    $region34: #{tpu_custom_call.1} parent=1 // pred_check
      _
    $region35: #{tpu_custom_call.1} parent=1 // pred_check_branch
      %454 = sbr.rel (0) target = $region37
    $region36: #{tpu_custom_call.1} parent=1 // pred_region
      %456 = vsyncadd [#allocation4], 0
      %s458 = sshll.u32 [#allocation5], 4
      %s459 = int_to_ptr.vmem [resolvable:$true] %s458
      %s460 = sshll.u32 %s7, 4
      %s461 = int_to_ptr.hbm [resolvable:$true] %s460
      %463 = dma.vmem_to_hbm [thread:$0]  %s459, 128, %s461, [#allocation4]
    $region37: #{tpu_custom_call.1} parent=1 // pred_fallthru
      _
    // Predicated region
    $region38: #{tpu_custom_call.1} parent=1 // pred_check
      _
    $region39: #{tpu_custom_call.1} parent=1 // pred_check_branch
      %465 = sbr.rel (0) target = $region41
    $region40: #{tpu_custom_call.1} parent=1 // pred_region
      %467 = dma.done [#allocation4], 128
    $region41: #{tpu_custom_call.1} parent=1 // pred_fallthru
      _
    %468 = vsyncpa [#allocation3], 1
    %469 = vsyncpa [#allocation4], 1

</llo_original>
